<compile_context>
chip_gen: v6e
topology: v6e:2x2x1
jax: 0.10.0
libtpu: 0.0.40
codegen_flags: <defaults>
</compile_context>

<pallas_src>
import functools

import jax
import jax.numpy as jnp
from jax import lax
from jax.experimental import pallas as pl
from jax.experimental.pallas import tpu as pltpu


# --------------------------------------------------------------------------
# Kernels
# --------------------------------------------------------------------------
def _onehot_matmul_kernel(labels_ref, table_ref, out_ref, *, table_rows: int):
    """Embed one (batch tile, H tile) via a one-hot MXU gather.

    labels_ref : VMEM, (tile_b, 1) int32   -- already CFG-dropped + clamped
    table_ref  : VMEM, (V, tile_h)         -- one H-chunk of the table
    out_ref    : VMEM, (tile_b, tile_h)
    """
    lbl = labels_ref[...]                                            # (tile_b, 1)
    tile_b = lbl.shape[0]
    iota = lax.broadcasted_iota(jnp.int32, (tile_b, table_rows), 1)  # (tile_b, V)
    one_hot = (lbl == iota).astype(table_ref.dtype)                  # (tile_b, V)
    # Exactly one 1.0 per row -> exact row selection.  HIGHEST precision so an
    # f32 table is reconstructed exactly (multi-pass bf16 split is lossless
    # when multiplied by 1.0).
    out_ref[...] = jnp.dot(
        one_hot, table_ref[...],
        preferred_element_type=jnp.float32,
        precision=lax.Precision.HIGHEST,
    ).astype(out_ref.dtype)


def _row_gather_kernel(labels_sref, table_row_ref, out_ref):
    """Scalar-prefetch row gather: the BlockSpec already fetched row labels[i].

    labels_sref   : SMEM, (B,) int32 (unused in body; consumed by index_maps)
    table_row_ref : VMEM, (1, H_pad) -- the gathered row
    out_ref       : VMEM, (1, H_pad)
    """
    del labels_sref
    out_ref[...] = table_row_ref[...]


# --------------------------------------------------------------------------
# Helpers
# --------------------------------------------------------------------------
def _round_up(x: int, m: int) -> int:
    return ((x + m - 1) // m) * m


def pad_table_lanes(table):
    """Pad the hidden dim up to a multiple of 128 lanes.

    Call ONCE at module init (hoisted out of the per-call forward: padding is
    a full-table HBM read+write).  No-op if H is already lane-aligned.
    """
    _, H = table.shape
    H_pad = _round_up(H, 128)
    if H_pad != H:
        table = jnp.pad(table, ((0, 0), (0, H_pad - H)))
    return table


def _max_tile_h() -> int:
    # ~2048 f32 lanes per table chunk on 128 MiB-VMEM parts (v5e/v6e),
    # ~1024 on 64 MiB parts (v7x).
    try:
        if pltpu.get_tpu_info().vmem_capacity_bytes >= (100 << 20):
            return 2048
    except Exception:
        pass
    return 1024


def _pick_tile_h(H_pad: int, max_tile_h: int) -> int:
    if H_pad <= max_tile_h:
        return H_pad
    t = (max_tile_h // 128) * 128
    while t > 128 and H_pad % t != 0:
        t -= 128
    return t  # 128 always divides H_pad


# --------------------------------------------------------------------------
# Path implementations
# --------------------------------------------------------------------------
def _forward_gather(labels, table):
    """HBM-minimal path for small B: fetch only the B needed rows."""
    (B,) = labels.shape
    V, H_pad = table.shape
    itemsize = jnp.dtype(table.dtype).itemsize

    grid_spec = pltpu.PrefetchScalarGridSpec(
        num_scalar_prefetch=1,          # labels land in SMEM
        grid=(B,),
        in_specs=[
            # Data-dependent row fetch: block index along rows == labels[i].
            pl.BlockSpec((1, H_pad), lambda i, lbl: (lbl[i], 0)),
        ],
        out_specs=pl.BlockSpec((1, H_pad), lambda i, lbl: (i, 0)),
    )
    out = pl.pallas_call(
        _row_gather_kernel,
        out_shape=jax.ShapeDtypeStruct((B, H_pad), table.dtype),
        grid_spec=grid_spec,
        compiler_params=pltpu.CompilerParams(
            dimension_semantics=("arbitrary",)),
        cost_estimate=pl.CostEstimate(
            flops=0,
            transcendentals=0,
            bytes_accessed=2 * B * H_pad * itemsize + 4 * B),
    )(labels, table)
    return out


def _forward_matmul(labels, table):
    """One-hot MXU gather, tiled over (H, batch) with batch innermost."""
    (B,) = labels.shape
    V, H_pad = table.shape
    itemsize = jnp.dtype(table.dtype).itemsize

    # Large batch tiles (256 fills the v6e/v7x MXU M dimension); a single tile
    # for typical batches.  Padded batch rows gather table[0] -- harmless,
    # they are sliced off below (do NOT convert to masked stores).
    if B <= 256:
        tile_b, B_pad = B, B
    else:
        tile_b = 256
        B_pad = _round_up(B, 256)
        labels = jnp.pad(labels, (0, B_pad - B))
    labels2d = labels.reshape(B_pad, 1)

    tile_h = _pick_tile_h(H_pad, _max_tile_h())
    n_h = H_pad // tile_h
    n_b = B_pad // tile_b

    if n_h == 1:
        # Constant block index -> never re-fetched; single-buffer it so the
        # dominant VMEM consumer (the table) isn't allocated twice.
        table_spec = pl.BlockSpec((V, tile_h), lambda h, b: (0, h),
                                  pipeline_mode=pl.Buffered(1))
    else:
        table_spec = pl.BlockSpec((V, tile_h), lambda h, b: (0, h))

    kernel = functools.partial(_onehot_matmul_kernel, table_rows=V)

    grid_spec = pltpu.PrefetchScalarGridSpec(
        num_scalar_prefetch=0,
        # Batch innermost: the table chunk's block index is constant across
        # the inner loop, so each H chunk is DMA'd once and revisited.
        grid=(n_h, n_b),
        in_specs=[
            pl.BlockSpec((tile_b, 1), lambda h, b: (b, 0)),
            table_spec,
        ],
        out_specs=pl.BlockSpec((tile_b, tile_h), lambda h, b: (b, h)),
    )

    out = pl.pallas_call(
        kernel,
        out_shape=jax.ShapeDtypeStruct((B_pad, H_pad), table.dtype),
        grid_spec=grid_spec,
        compiler_params=pltpu.CompilerParams(
            # H parallel: on v7x the two TensorCores split the table read
            # instead of each fetching a private full copy.
            dimension_semantics=("parallel", "arbitrary")),
        cost_estimate=pl.CostEstimate(
            flops=2 * B_pad * V * H_pad,
            transcendentals=0,
            bytes_accessed=(V * H_pad + B_pad * H_pad) * itemsize + 4 * B_pad),
    )(labels2d, table)
    return out[:B]


# --------------------------------------------------------------------------
# Public forward (LabelEmbedder.forward semantics)
# --------------------------------------------------------------------------
def label_embedder_forward(labels, table, *, num_classes, dropout_prob,
                           train, force_drop_ids=None, key=None,
                           hidden_size=None, method="auto"):
    """JAX/Pallas equivalent of LabelEmbedder.forward.

    `table` should be pre-padded with pad_table_lanes() at init; if not, it is
    padded here (costs a per-call table copy).  `hidden_size` is the logical
    embedding width (defaults to the table's un-padded width).
    """
    labels = labels.astype(jnp.int32)
    (B,) = labels.shape
    V, H_table = table.shape
    if hidden_size is None:
        hidden_size = H_table

    # ---- classifier-free-guidance token drop (wrapper glue) ----------------
    use_dropout = dropout_prob > 0
    do_drop = (train and use_dropout) or (force_drop_ids is not None)
    if do_drop:
        if V <= num_classes:
            raise ValueError(
                "token drop requested but the embedding table has no CFG row "
                "(module was built with dropout_prob == 0)")
        if force_drop_ids is None:
            assert key is not None, "need a PRNG key for random label drop"
            drop = jax.random.uniform(key, (B,)) < dropout_prob
        else:
            drop = force_drop_ids == 1
        labels = jnp.where(drop, num_classes, labels)
    # Clamp: out-of-range gathers would silently read garbage on TPU.
    labels = jnp.clip(labels, 0, V - 1)

    # ---- lane-dense table (should already be padded at init) ---------------
    if H_table % 128 != 0:
        table = pad_table_lanes(table)
    H_pad = table.shape[1]

    # ---- path selection -----------------------------------------------------
    if method == "auto":
        # Gather wins when table bytes (V*H) dwarf output bytes (B*H), i.e.
        # small-batch inference against a large class table.
        method = "gather" if V >= 64 * max(B, 1) else "matmul"

    if method == "gather":
        out = _forward_gather(labels, table)
    else:
        out = _forward_matmul(labels, table)

    return out[:, :hidden_size]


# --------------------------------------------------------------------------
# Demo / self-test
# --------------------------------------------------------------------------
if __name__ == "__main__":
    num_classes = 16
    hidden_size = 32            # not a multiple of 128 -> exercises lane padding
    dropout_prob = 0.1          # > 0  => extra CFG embedding row
    B = 8

    key = jax.random.PRNGKey(0)
    k_table, k_labels = jax.random.split(key)

    V = num_classes + 1         # use_cfg_embedding = True
    table = jax.random.normal(k_table, (V, hidden_size), dtype=jnp.float32) * 0.02
    labels = jax.random.randint(k_labels, (B,), 0, num_classes, dtype=jnp.int32)

    # Pad the table ONCE (hoisted out of per-call forward, per perf review).
    table_padded = pad_table_lanes(table)

    # Deterministic CFG drop pattern (exercises token_drop).
    force_drop_ids = jnp.array([0, 1, 0, 0, 1, 0, 0, 0], dtype=jnp.int32)
    dropped = jnp.where(force_drop_ids == 1, num_classes, labels)
    ref = table[dropped]

    # ---- matmul (one-hot MXU) path ------------------------------------------
    out_mm = jax.block_until_ready(label_embedder_forward(
        labels, table_padded,
        num_classes=num_classes, dropout_prob=dropout_prob,
        train=True, force_drop_ids=force_drop_ids,
        hidden_size=hidden_size, method="matmul"))
    assert out_mm.shape == (B, hidden_size)
    assert out_mm.dtype == jnp.float32
    assert jnp.allclose(out_mm, ref, rtol=1e-6, atol=1e-6), \
        "matmul path mismatch vs reference embedding lookup"

    # ---- scalar-prefetch row-gather path (small-B fast path) ----------------
    out_g = jax.block_until_ready(label_embedder_forward(
        labels, table_padded,
        num_classes=num_classes, dropout_prob=dropout_prob,
        train=True, force_drop_ids=force_drop_ids,
        hidden_size=hidden_size, method="gather"))
    assert out_g.shape == (B, hidden_size)
    assert jnp.array_equal(out_g, ref), \
        "gather path mismatch vs reference embedding lookup"

    # ---- eval path (no dropout) ---------------------------------------------
    out_eval = jax.block_until_ready(label_embedder_forward(
        labels, table_padded,
        num_classes=num_classes, dropout_prob=dropout_prob,
        train=False, hidden_size=hidden_size, method="auto"))
    assert jnp.allclose(out_eval, table[labels], rtol=1e-6, atol=1e-6)

    print("KERNEL_OK")
</pallas_src>

<mosaic_0001>
module attributes {stable_mosaic.version = 11 : i64} {
  func.func @_onehot_matmul_kernel(%arg0: i32, %arg1: i32, %arg2: memref<8x1xi32, #tpu.memory_space<vmem>>, %arg3: memref<17x128xf32, #tpu.memory_space<vmem>>, %arg4: memref<8x128xf32, #tpu.memory_space<vmem>>) attributes {dimension_semantics = [#tpu.dimension_semantics<parallel>, #tpu.dimension_semantics<arbitrary>], iteration_bounds = array<i64: 1, 1>, scalar_prefetch = 0 : i64, scratch_operands = 0 : i64, tpu.core_type = #tpu.core_type<tc>, window_params = [{transform_indices = @transform_0, window_bounds = array<i64: 8, 1>}, {pipeline_mode = #tpu.pipeline_mode<synchronous>, transform_indices = @transform_1, window_bounds = array<i64: 17, 128>}, {transform_indices = @transform_2, window_bounds = array<i64: 8, 128>}]} {
    %c0 = arith.constant 0 : index
    %c0_0 = arith.constant 0 : index
    %0 = vector.load %arg2[%c0, %c0_0] : memref<8x1xi32, #tpu.memory_space<vmem>>, vector<8x1xi32>
    %1 = tpu.iota {dimensions = array<i32: 1>} : vector<8x17xi32>
    %2 = vector.broadcast %0 : vector<8x1xi32> to vector<8x17xi32>
    %3 = arith.cmpi eq, %2, %1 : vector<8x17xi32>
    %4 = arith.extui %3 : vector<8x17xi1> to vector<8x17xi32>
    %5 = arith.sitofp %4 : vector<8x17xi32> to vector<8x17xf32>
    %c0_1 = arith.constant 0 : index
    %c0_2 = arith.constant 0 : index
    %6 = vector.load %arg3[%c0_1, %c0_2] : memref<17x128xf32, #tpu.memory_space<vmem>>, vector<17x128xf32>
    %cst = arith.constant dense<0.000000e+00> : vector<8x128xf32>
    %7 = tpu.matmul %5, %6, %cst {dimension_numbers = #tpu.dot_dimension_numbers<[1], [0], [0], [1], [0, 0, 1, 1], [], []>, precision = #tpu.contract_precision<fp32>} : vector<8x17xf32>, vector<17x128xf32>, vector<8x128xf32> -> vector<8x128xf32>
    %c0_3 = arith.constant 0 : index
    %c0_4 = arith.constant 0 : index
    %8 = vector.load %arg4[%c0_3, %c0_4] : memref<8x128xf32, #tpu.memory_space<vmem>>, vector<8x128xf32>
    tpu.vector_store %arg4[%c0_3, %c0_4], %7 {strides = array<i32>} : memref<8x128xf32, #tpu.memory_space<vmem>>, vector<8x128xf32>,
    return
  }
  func.func @transform_0(%arg0: i32, %arg1: i32) -> (i32, i32) {
    %c0_i32 = arith.constant 0 : i32
    %c0_i32_0 = arith.constant 0 : i32
    return %arg1, %c0_i32 : i32, i32
  }
  func.func @transform_1(%arg0: i32, %arg1: i32) -> (i32, i32) {
    %c0_i32 = arith.constant 0 : i32
    %c0_i32_0 = arith.constant 0 : i32
    return %c0_i32, %arg0 : i32, i32
  }
  func.func @transform_2(%arg0: i32, %arg1: i32) -> (i32, i32) {
    %c0_i32 = arith.constant 0 : i32
    return %arg1, %arg0 : i32, i32
  }
}

</mosaic_0001>

<llo_original>
// kernel: tpu_custom_call.1
$region0: #{tpu_custom_call.1}
  #allocation0 [shape = 'u32[]', space=smem, size = 0x4, offset = 0x4, fixed_abs, tag = 'smem constant byte address 0x4 - core index']
  #allocation1 [shape = 'u32[144,128]{1,0:T(1,128)}', space=vmem, size = 0x12000, scoped, tag = 'internal scratch']
  %s0 = inlined_call_operand.vmem [shape: s32[8,1], index: 0, kind: input, shape index: {}]
  %s1 = inlined_call_operand.hbm [shape: f32[17,128], index: 1, kind: input, shape index: {}]
  %s2 = inlined_call_operand.hbm [shape: f32[8,128], index: 2, kind: output, shape index: {}]
  %s3 = sld [smem:[#allocation0]]
  $region22: #{tpu_custom_call.1} parent=0
    _
  %s5 = ssub.s32 1, %s3
  %s6 = scalar_select 0, %s5, %s3
  $region1: #{tpu_custom_call.1} parent=0
    #allocation2 [shape = 'u8[12288]{0}', space=vmem, size = 0x3000, scoped, tag = 'input window, operand 1, single buffered']
    #allocation3 [shape = 's32[1]{0}', space=sflag, size = 0x4, scoped, tag = 'scoped memory for tpu_custom_call.1']
    #allocation4 [shape = 's32[1]{0}', space=sflag, size = 0x4, scoped, tag = 'scoped memory for tpu_custom_call.1']
    #allocation5 [shape = 'u8[4096]{0}', space=vmem, size = 0x1000, scoped, tag = 'output window, operand 0, single buffered']
    %7 = vsyncpa [#allocation3], 0
    %8 = vsyncpa [#allocation4], 0
    // Predicated region
    $region2: #{tpu_custom_call.1} parent=1 // pred_check
      _
    $region3: #{tpu_custom_call.1} parent=1 // pred_check_branch
      %10 = sbr.rel (0) target = $region5
    $region4: #{tpu_custom_call.1} parent=1 // pred_region
      _
    $region5: #{tpu_custom_call.1} parent=1 // pred_fallthru
      _
    // Predicated region
    $region6: #{tpu_custom_call.1} parent=1 // pred_check
      _
    $region7: #{tpu_custom_call.1} parent=1 // pred_check_branch
      %12 = sbr.rel (0) target = $region9
    $region8: #{tpu_custom_call.1} parent=1 // pred_region
      %s14 = ssub.s32 384, 384
      %15 = vsyncadd [#allocation3], %s14
      %s16 = sshll.u32 [#allocation2], 4
      %s17 = int_to_ptr.vmem [resolvable:$true] %s16
      %22 = dma.hbm_to_vmem [thread:$0]  %s1, 384, %s17, [#allocation3], 128, 128, 8
    $region9: #{tpu_custom_call.1} parent=1 // pred_fallthru
      _
    // Predicated region
    $region10: #{tpu_custom_call.1} parent=1 // pred_check
      _
    $region11: #{tpu_custom_call.1} parent=1 // pred_check_branch
      %24 = sbr.rel (0) target = $region13
    $region12: #{tpu_custom_call.1} parent=1 // pred_region
      %25 = dma.done [#allocation3], 384
    $region13: #{tpu_custom_call.1} parent=1 // pred_fallthru
      _
    %v26 = vld [vmem:[%s0] sm:$0xff]
    %v27 = vlaneseq
    %v28 = vand.u32 %v27, 127
    %29 = vset.pattern.permute.xlu0 0
    %30 = vperm.xlu0 %29, %v26
    %v31 = vpop.permute.xlu0 %30
    %vm32 = vcmp.eq.s32.totalorder %v31, %v28
    %v33 = vsel %vm32, 1, 0
    %v34 = vcvt.s32.f32 %v33
    %v35 = vld [vmem:[#allocation2] sm:$0xff]
    %v36 = vld [vmem:[#allocation2 + $0x8] sm:$0xff]
    %v37 = vld [vmem:[#allocation2 + $0x10] sm:$0x1]
    %vm38 = vcmask 138240
    %v40 = vsel %vm38, %v34, 0
    %vm42 = vcmask 1040384
    %v44 = vsel %vm42, %v37, 0
    %46 = vmatprep.subr.mxu0 0.0
    %47 = vmatpush1.msra.mxu0 0.0
    %48 = vmatprep.subr.mxu0 0.0
    %49 = vmatpush1.msra.mxu0 0.0
    %50 = vmatprep.subr.mxu0 0.0
    %51 = vmatpush1.msra.mxu0 0.0
    %52 = vmatprep.subr.mxu0 0.0
    %53 = vmatpush1.msra.mxu0 0.0
    %54 = vmatprep.subr.mxu0 0.0
    %55 = vmatpush1.msra.mxu0 0.0
    %56 = vmatprep.subr.mxu0 0.0
    %57 = vmatpush1.msra.mxu0 0.0
    %58 = vmatprep.subr.mxu0 0.0
    %59 = vmatpush1.msra.mxu0 0.0
    %60 = vmatprep.subr.mxu0 0.0
    %61 = vmatpush1.msra.mxu0 0.0
    %62 = vmatprep.subr.mxu0 0.0
    %63 = vmatpush1.msra.mxu0 0.0
    %64 = vmatprep.subr.mxu0 0.0
    %65 = vmatpush1.msra.mxu0 0.0
    %66 = vmatprep.subr.mxu0 0.0
    %67 = vmatpush1.msra.mxu0 0.0
    %68 = vmatprep.subr.mxu0 0.0
    %69 = vmatpush1.msra.mxu0 0.0
    %70 = vmatprep.subr.mxu0 0.0
    %71 = vmatpush1.msra.mxu0 0.0
    %72 = vmatprep.subr.mxu0 0.0
    %v73 = vand.u32 %v44, 4294901760
    %74 = vmatpush1.msra.mxu0 %v73
    %75 = vmatprep.subr.mxu0 0.0
    %v76 = vand.u32 %v36, 4294901760
    %77 = vmatpush1.msra.mxu0 %v76
    %78 = vmatprep.subr.mxu0 0.0
    %v79 = vand.u32 %v35, 4294901760
    %80 = vmatpush1.msra.mxu0 %v79
    %81 = vmatprep.subr.mxu0 0.0
    %82 = vmatpush2.msra.mxu0 0.0
    %83 = vmatprep.subr.mxu0 0.0
    %84 = vmatpush2.msra.mxu0 0.0
    %85 = vmatprep.subr.mxu0 0.0
    %86 = vmatpush2.msra.mxu0 0.0
    %87 = vmatprep.subr.mxu0 0.0
    %88 = vmatpush2.msra.mxu0 0.0
    %89 = vmatprep.subr.mxu0 0.0
    %90 = vmatpush2.msra.mxu0 0.0
    %91 = vmatprep.subr.mxu0 0.0
    %92 = vmatpush2.msra.mxu0 0.0
    %93 = vmatprep.subr.mxu0 0.0
    %94 = vmatpush2.msra.mxu0 0.0
    %95 = vmatprep.subr.mxu0 0.0
    %96 = vmatpush2.msra.mxu0 0.0
    %97 = vmatprep.subr.mxu0 0.0
    %98 = vmatpush2.msra.mxu0 0.0
    %99 = vmatprep.subr.mxu0 0.0
    %100 = vmatpush2.msra.mxu0 0.0
    %101 = vmatprep.subr.mxu0 0.0
    %102 = vmatpush2.msra.mxu0 0.0
    %103 = vmatprep.subr.mxu0 0.0
    %104 = vmatpush2.msra.mxu0 0.0
    %105 = vmatprep.subr.mxu0 0.0
    %106 = vmatpush2.msra.mxu0 0.0
    %107 = vmatprep.subr.mxu0 0.0
    %108 = vmatpush2.msra.mxu0 0.0
    %109 = vmatprep.subr.mxu0 0.0
    %110 = vmatpush2.msra.mxu0 0.0
    %111 = vmatprep.subr.mxu0 0.0
    %112 = vmatpush2.msra.mxu0 0.0
    %113 = vmatprep.mubr.f32.mxu0 0.0
    %v114 = vand.u32 %v40, 4294901760
    %v115 = vsub.f32 %v40, %v114
    %v116 = vand.u32 %v115, 4294901760
    %v117 = vsub.f32 %v115, %v116
    %v118 = vand.u32 %v117, 4294901760
    %119 = vmatmul.mubr.f32.gmra.mxu0 %v118
    %v120 = vpop.f32.mrf.mxu0
    %v121 = vadd.f32 0.0, %v120
    %v122 = vpop.f32.mrf.mxu0
    %123 = vdwg.mxu0
    %124 = vmatprep.subr.mxu0 0.0
    %125 = vmatpush1.msra.mxu0 0.0
    %126 = vmatprep.subr.mxu0 0.0
    %127 = vmatpush1.msra.mxu0 0.0
    %128 = vmatprep.subr.mxu0 0.0
    %129 = vmatpush1.msra.mxu0 0.0
    %130 = vmatprep.subr.mxu0 0.0
    %131 = vmatpush1.msra.mxu0 0.0
    %132 = vmatprep.subr.mxu0 0.0
    %133 = vmatpush1.msra.mxu0 0.0
    %134 = vmatprep.subr.mxu0 0.0
    %135 = vmatpush1.msra.mxu0 0.0
    %136 = vmatprep.subr.mxu0 0.0
    %137 = vmatpush1.msra.mxu0 0.0
    %138 = vmatprep.subr.mxu0 0.0
    %139 = vmatpush1.msra.mxu0 0.0
    %140 = vmatprep.subr.mxu0 0.0
    %141 = vmatpush1.msra.mxu0 0.0
    %142 = vmatprep.subr.mxu0 0.0
    %143 = vmatpush1.msra.mxu0 0.0
    %144 = vmatprep.subr.mxu0 0.0
    %145 = vmatpush1.msra.mxu0 0.0
    %146 = vmatprep.subr.mxu0 0.0
    %147 = vmatpush1.msra.mxu0 0.0
    %148 = vmatprep.subr.mxu0 0.0
    %149 = vmatpush1.msra.mxu0 0.0
    %150 = vmatprep.subr.mxu0 0.0
    %v151 = vand.u32 %v44, 4294901760
    %v152 = vsub.f32 %v44, %v151
    %v153 = vand.u32 %v152, 4294901760
    %v154 = vsub.f32 %v152, %v153
    %v155 = vand.u32 %v154, 4294901760
    %156 = vmatpush1.msra.mxu0 %v155
    %157 = vmatprep.subr.mxu0 0.0
    %v158 = vand.u32 %v36, 4294901760
    %v159 = vsub.f32 %v36, %v158
    %v160 = vand.u32 %v159, 4294901760
    %v161 = vsub.f32 %v159, %v160
    %v162 = vand.u32 %v161, 4294901760
    %163 = vmatpush1.msra.mxu0 %v162
    %164 = vmatprep.subr.mxu0 0.0
    %v165 = vand.u32 %v35, 4294901760
    %v166 = vsub.f32 %v35, %v165
    %v167 = vand.u32 %v166, 4294901760
    %v168 = vsub.f32 %v166, %v167
    %v169 = vand.u32 %v168, 4294901760
    %170 = vmatpush1.msra.mxu0 %v169
    %171 = vmatprep.subr.mxu0 0.0
    %172 = vmatpush2.msra.mxu0 0.0
    %173 = vmatprep.subr.mxu0 0.0
    %174 = vmatpush2.msra.mxu0 0.0
    %175 = vmatprep.subr.mxu0 0.0
    %176 = vmatpush2.msra.mxu0 0.0
    %177 = vmatprep.subr.mxu0 0.0
    %178 = vmatpush2.msra.mxu0 0.0
    %179 = vmatprep.subr.mxu0 0.0
    %180 = vmatpush2.msra.mxu0 0.0
    %181 = vmatprep.subr.mxu0 0.0
    %182 = vmatpush2.msra.mxu0 0.0
    %183 = vmatprep.subr.mxu0 0.0
    %184 = vmatpush2.msra.mxu0 0.0
    %185 = vmatprep.subr.mxu0 0.0
    %186 = vmatpush2.msra.mxu0 0.0
    %187 = vmatprep.subr.mxu0 0.0
    %188 = vmatpush2.msra.mxu0 0.0
    %189 = vmatprep.subr.mxu0 0.0
    %190 = vmatpush2.msra.mxu0 0.0
    %191 = vmatprep.subr.mxu0 0.0
    %192 = vmatpush2.msra.mxu0 0.0
    %193 = vmatprep.subr.mxu0 0.0
    %194 = vmatpush2.msra.mxu0 0.0
    %195 = vmatprep.subr.mxu0 0.0
    %196 = vmatpush2.msra.mxu0 0.0
    %197 = vmatprep.subr.mxu0 0.0
    %198 = vmatpush2.msra.mxu0 0.0
    %199 = vmatprep.subr.mxu0 0.0
    %200 = vmatpush2.msra.mxu0 0.0
    %201 = vmatprep.subr.mxu0 0.0
    %202 = vmatpush2.msra.mxu0 0.0
    %203 = vmatprep.mubr.f32.mxu0 0.0
    %v204 = vand.u32 %v40, 4294901760
    %205 = vmatmul.mubr.f32.gmra.mxu0 %v204
    %v206 = vpop.f32.mrf.mxu0
    %v207 = vadd.f32 %v121, %v206
    %v208 = vpop.f32.mrf.mxu0
    %209 = vdwg.mxu0
    %210 = vmatprep.subr.mxu0 0.0
    %211 = vmatpush1.msra.mxu0 0.0
    %212 = vmatprep.subr.mxu0 0.0
    %213 = vmatpush1.msra.mxu0 0.0
    %214 = vmatprep.subr.mxu0 0.0
    %215 = vmatpush1.msra.mxu0 0.0
    %216 = vmatprep.subr.mxu0 0.0
    %217 = vmatpush1.msra.mxu0 0.0
    %218 = vmatprep.subr.mxu0 0.0
    %219 = vmatpush1.msra.mxu0 0.0
    %220 = vmatprep.subr.mxu0 0.0
    %221 = vmatpush1.msra.mxu0 0.0
    %222 = vmatprep.subr.mxu0 0.0
    %223 = vmatpush1.msra.mxu0 0.0
    %224 = vmatprep.subr.mxu0 0.0
    %225 = vmatpush1.msra.mxu0 0.0
    %226 = vmatprep.subr.mxu0 0.0
    %227 = vmatpush1.msra.mxu0 0.0
    %228 = vmatprep.subr.mxu0 0.0
    %229 = vmatpush1.msra.mxu0 0.0
    %230 = vmatprep.subr.mxu0 0.0
    %231 = vmatpush1.msra.mxu0 0.0
    %232 = vmatprep.subr.mxu0 0.0
    %233 = vmatpush1.msra.mxu0 0.0
    %234 = vmatprep.subr.mxu0 0.0
    %235 = vmatpush1.msra.mxu0 0.0
    %236 = vmatprep.subr.mxu0 0.0
    %v237 = vand.u32 %v44, 4294901760
    %v238 = vsub.f32 %v44, %v237
    %239 = vmatpush1.msra.mxu0 %v238
    %240 = vmatprep.subr.mxu0 0.0
    %v241 = vand.u32 %v36, 4294901760
    %v242 = vsub.f32 %v36, %v241
    %243 = vmatpush1.msra.mxu0 %v242
    %244 = vmatprep.subr.mxu0 0.0
    %v245 = vand.u32 %v35, 4294901760
    %v246 = vsub.f32 %v35, %v245
    %247 = vmatpush1.msra.mxu0 %v246
    %248 = vmatprep.subr.mxu0 0.0
    %249 = vmatpush2.msra.mxu0 0.0
    %250 = vmatprep.subr.mxu0 0.0
    %251 = vmatpush2.msra.mxu0 0.0
    %252 = vmatprep.subr.mxu0 0.0
    %253 = vmatpush2.msra.mxu0 0.0
    %254 = vmatprep.subr.mxu0 0.0
    %255 = vmatpush2.msra.mxu0 0.0
    %256 = vmatprep.subr.mxu0 0.0
    %257 = vmatpush2.msra.mxu0 0.0
    %258 = vmatprep.subr.mxu0 0.0
    %259 = vmatpush2.msra.mxu0 0.0
    %260 = vmatprep.subr.mxu0 0.0
    %261 = vmatpush2.msra.mxu0 0.0
    %262 = vmatprep.subr.mxu0 0.0
    %263 = vmatpush2.msra.mxu0 0.0
    %264 = vmatprep.subr.mxu0 0.0
    %265 = vmatpush2.msra.mxu0 0.0
    %266 = vmatprep.subr.mxu0 0.0
    %267 = vmatpush2.msra.mxu0 0.0
    %268 = vmatprep.subr.mxu0 0.0
    %269 = vmatpush2.msra.mxu0 0.0
    %270 = vmatprep.subr.mxu0 0.0
    %271 = vmatpush2.msra.mxu0 0.0
    %272 = vmatprep.subr.mxu0 0.0
    %273 = vmatpush2.msra.mxu0 0.0
    %274 = vmatprep.subr.mxu0 0.0
    %275 = vmatpush2.msra.mxu0 0.0
    %276 = vmatprep.subr.mxu0 0.0
    %277 = vmatpush2.msra.mxu0 0.0
    %278 = vmatprep.subr.mxu0 0.0
    %279 = vmatpush2.msra.mxu0 0.0
    %280 = vmatprep.mubr.f32.mxu0 0.0
    %v281 = vand.u32 %v40, 4294901760
    %v282 = vsub.f32 %v40, %v281
    %283 = vmatmul.mubr.f32.gmra.mxu0 %v282
    %v284 = vpop.f32.mrf.mxu0
    %v285 = vadd.f32 %v207, %v284
    %v286 = vpop.f32.mrf.mxu0
    %287 = vdwg.mxu0
    %288 = vmatprep.subr.mxu0 0.0
    %289 = vmatpush1.msra.mxu0 0.0
    %290 = vmatprep.subr.mxu0 0.0
    %291 = vmatpush1.msra.mxu0 0.0
    %292 = vmatprep.subr.mxu0 0.0
    %293 = vmatpush1.msra.mxu0 0.0
    %294 = vmatprep.subr.mxu0 0.0
    %295 = vmatpush1.msra.mxu0 0.0
    %296 = vmatprep.subr.mxu0 0.0
    %297 = vmatpush1.msra.mxu0 0.0
    %298 = vmatprep.subr.mxu0 0.0
    %299 = vmatpush1.msra.mxu0 0.0
    %300 = vmatprep.subr.mxu0 0.0
    %301 = vmatpush1.msra.mxu0 0.0
    %302 = vmatprep.subr.mxu0 0.0
    %303 = vmatpush1.msra.mxu0 0.0
    %304 = vmatprep.subr.mxu0 0.0
    %305 = vmatpush1.msra.mxu0 0.0
    %306 = vmatprep.subr.mxu0 0.0
    %307 = vmatpush1.msra.mxu0 0.0
    %308 = vmatprep.subr.mxu0 0.0
    %309 = vmatpush1.msra.mxu0 0.0
    %310 = vmatprep.subr.mxu0 0.0
    %311 = vmatpush1.msra.mxu0 0.0
    %312 = vmatprep.subr.mxu0 0.0
    %313 = vmatpush1.msra.mxu0 0.0
    %314 = vmatprep.subr.mxu0 0.0
    %v315 = vand.u32 %v44, 4294901760
    %316 = vmatpush1.msra.mxu0 %v315
    %317 = vmatprep.subr.mxu0 0.0
    %v318 = vand.u32 %v36, 4294901760
    %319 = vmatpush1.msra.mxu0 %v318
    %320 = vmatprep.subr.mxu0 0.0
    %v321 = vand.u32 %v35, 4294901760
    %322 = vmatpush1.msra.mxu0 %v321
    %323 = vmatprep.subr.mxu0 0.0
    %324 = vmatpush2.msra.mxu0 0.0
    %325 = vmatprep.subr.mxu0 0.0
    %326 = vmatpush2.msra.mxu0 0.0
    %327 = vmatprep.subr.mxu0 0.0
    %328 = vmatpush2.msra.mxu0 0.0
    %329 = vmatprep.subr.mxu0 0.0
    %330 = vmatpush2.msra.mxu0 0.0
    %331 = vmatprep.subr.mxu0 0.0
    %332 = vmatpush2.msra.mxu0 0.0
    %333 = vmatprep.subr.mxu0 0.0
    %334 = vmatpush2.msra.mxu0 0.0
    %335 = vmatprep.subr.mxu0 0.0
    %336 = vmatpush2.msra.mxu0 0.0
    %337 = vmatprep.subr.mxu0 0.0
    %338 = vmatpush2.msra.mxu0 0.0
    %339 = vmatprep.subr.mxu0 0.0
    %340 = vmatpush2.msra.mxu0 0.0
    %341 = vmatprep.subr.mxu0 0.0
    %342 = vmatpush2.msra.mxu0 0.0
    %343 = vmatprep.subr.mxu0 0.0
    %344 = vmatpush2.msra.mxu0 0.0
    %345 = vmatprep.subr.mxu0 0.0
    %346 = vmatpush2.msra.mxu0 0.0
    %347 = vmatprep.subr.mxu0 0.0
    %348 = vmatpush2.msra.mxu0 0.0
    %349 = vmatprep.subr.mxu0 0.0
    %350 = vmatpush2.msra.mxu0 0.0
    %351 = vmatprep.subr.mxu0 0.0
    %352 = vmatpush2.msra.mxu0 0.0
    %353 = vmatprep.subr.mxu0 0.0
    %354 = vmatpush2.msra.mxu0 0.0
    %355 = vmatprep.mubr.f32.mxu0 0.0
    %v356 = vand.u32 %v40, 4294901760
    %v357 = vsub.f32 %v40, %v356
    %v358 = vand.u32 %v357, 4294901760
    %359 = vmatmul.mubr.f32.gmra.mxu0 %v358
    %v360 = vpop.f32.mrf.mxu0
    %v361 = vadd.f32 %v285, %v360
    %v362 = vpop.f32.mrf.mxu0
    %363 = vdwg.mxu0
    %364 = vmatprep.subr.mxu0 0.0
    %365 = vmatpush1.msra.mxu0 0.0
    %366 = vmatprep.subr.mxu0 0.0
    %367 = vmatpush1.msra.mxu0 0.0
    %368 = vmatprep.subr.mxu0 0.0
    %369 = vmatpush1.msra.mxu0 0.0
    %370 = vmatprep.subr.mxu0 0.0
    %371 = vmatpush1.msra.mxu0 0.0
    %372 = vmatprep.subr.mxu0 0.0
    %373 = vmatpush1.msra.mxu0 0.0
    %374 = vmatprep.subr.mxu0 0.0
    %375 = vmatpush1.msra.mxu0 0.0
    %376 = vmatprep.subr.mxu0 0.0
    %377 = vmatpush1.msra.mxu0 0.0
    %378 = vmatprep.subr.mxu0 0.0
    %379 = vmatpush1.msra.mxu0 0.0
    %380 = vmatprep.subr.mxu0 0.0
    %381 = vmatpush1.msra.mxu0 0.0
    %382 = vmatprep.subr.mxu0 0.0
    %383 = vmatpush1.msra.mxu0 0.0
    %384 = vmatprep.subr.mxu0 0.0
    %385 = vmatpush1.msra.mxu0 0.0
    %386 = vmatprep.subr.mxu0 0.0
    %387 = vmatpush1.msra.mxu0 0.0
    %388 = vmatprep.subr.mxu0 0.0
    %389 = vmatpush1.msra.mxu0 0.0
    %390 = vmatprep.subr.mxu0 0.0
    %v391 = vand.u32 %v44, 4294901760
    %v392 = vsub.f32 %v44, %v391
    %v393 = vand.u32 %v392, 4294901760
    %394 = vmatpush1.msra.mxu0 %v393
    %395 = vmatprep.subr.mxu0 0.0
    %v396 = vand.u32 %v36, 4294901760
    %v397 = vsub.f32 %v36, %v396
    %v398 = vand.u32 %v397, 4294901760
    %399 = vmatpush1.msra.mxu0 %v398
    %400 = vmatprep.subr.mxu0 0.0
    %v401 = vand.u32 %v35, 4294901760
    %v402 = vsub.f32 %v35, %v401
    %v403 = vand.u32 %v402, 4294901760
    %404 = vmatpush1.msra.mxu0 %v403
    %405 = vmatprep.subr.mxu0 0.0
    %406 = vmatpush2.msra.mxu0 0.0
    %407 = vmatprep.subr.mxu0 0.0
    %408 = vmatpush2.msra.mxu0 0.0
    %409 = vmatprep.subr.mxu0 0.0
    %410 = vmatpush2.msra.mxu0 0.0
    %411 = vmatprep.subr.mxu0 0.0
    %412 = vmatpush2.msra.mxu0 0.0
    %413 = vmatprep.subr.mxu0 0.0
    %414 = vmatpush2.msra.mxu0 0.0
    %415 = vmatprep.subr.mxu0 0.0
    %416 = vmatpush2.msra.mxu0 0.0
    %417 = vmatprep.subr.mxu0 0.0
    %418 = vmatpush2.msra.mxu0 0.0
    %419 = vmatprep.subr.mxu0 0.0
    %420 = vmatpush2.msra.mxu0 0.0
    %421 = vmatprep.subr.mxu0 0.0
    %422 = vmatpush2.msra.mxu0 0.0
    %423 = vmatprep.subr.mxu0 0.0
    %424 = vmatpush2.msra.mxu0 0.0
    %425 = vmatprep.subr.mxu0 0.0
    %426 = vmatpush2.msra.mxu0 0.0
    %427 = vmatprep.subr.mxu0 0.0
    %428 = vmatpush2.msra.mxu0 0.0
    %429 = vmatprep.subr.mxu0 0.0
    %430 = vmatpush2.msra.mxu0 0.0
    %431 = vmatprep.subr.mxu0 0.0
    %432 = vmatpush2.msra.mxu0 0.0
    %433 = vmatprep.subr.mxu0 0.0
    %434 = vmatpush2.msra.mxu0 0.0
    %435 = vmatprep.subr.mxu0 0.0
    %436 = vmatpush2.msra.mxu0 0.0
    %437 = vmatprep.mubr.f32.mxu0 0.0
    %v438 = vand.u32 %v40, 4294901760
    %439 = vmatmul.mubr.f32.gmra.mxu0 %v438
    %v440 = vpop.f32.mrf.mxu0
    %v441 = vadd.f32 %v361, %v440
    %v442 = vpop.f32.mrf.mxu0
    %443 = vdwg.mxu0
    %444 = vmatprep.subr.mxu0 0.0
    %445 = vmatpush1.msra.mxu0 0.0
    %446 = vmatprep.subr.mxu0 0.0
    %447 = vmatpush1.msra.mxu0 0.0
    %448 = vmatprep.subr.mxu0 0.0
    %449 = vmatpush1.msra.mxu0 0.0
    %450 = vmatprep.subr.mxu0 0.0
    %451 = vmatpush1.msra.mxu0 0.0
    %452 = vmatprep.subr.mxu0 0.0
    %453 = vmatpush1.msra.mxu0 0.0
    %454 = vmatprep.subr.mxu0 0.0
    %455 = vmatpush1.msra.mxu0 0.0
    %456 = vmatprep.subr.mxu0 0.0
    %457 = vmatpush1.msra.mxu0 0.0
    %458 = vmatprep.subr.mxu0 0.0
    %459 = vmatpush1.msra.mxu0 0.0
    %460 = vmatprep.subr.mxu0 0.0
    %461 = vmatpush1.msra.mxu0 0.0
    %462 = vmatprep.subr.mxu0 0.0
    %463 = vmatpush1.msra.mxu0 0.0
    %464 = vmatprep.subr.mxu0 0.0
    %465 = vmatpush1.msra.mxu0 0.0
    %466 = vmatprep.subr.mxu0 0.0
    %467 = vmatpush1.msra.mxu0 0.0
    %468 = vmatprep.subr.mxu0 0.0
    %469 = vmatpush1.msra.mxu0 0.0
    %470 = vmatprep.subr.mxu0 0.0
    %v471 = vand.u32 %v44, 4294901760
    %472 = vmatpush1.msra.mxu0 %v471
    %473 = vmatprep.subr.mxu0 0.0
    %v474 = vand.u32 %v36, 4294901760
    %475 = vmatpush1.msra.mxu0 %v474
    %476 = vmatprep.subr.mxu0 0.0
    %v477 = vand.u32 %v35, 4294901760
    %478 = vmatpush1.msra.mxu0 %v477
    %479 = vmatprep.subr.mxu0 0.0
    %480 = vmatpush2.msra.mxu0 0.0
    %481 = vmatprep.subr.mxu0 0.0
    %482 = vmatpush2.msra.mxu0 0.0
    %483 = vmatprep.subr.mxu0 0.0
    %484 = vmatpush2.msra.mxu0 0.0
    %485 = vmatprep.subr.mxu0 0.0
    %486 = vmatpush2.msra.mxu0 0.0
    %487 = vmatprep.subr.mxu0 0.0
    %488 = vmatpush2.msra.mxu0 0.0
    %489 = vmatprep.subr.mxu0 0.0
    %490 = vmatpush2.msra.mxu0 0.0
    %491 = vmatprep.subr.mxu0 0.0
    %492 = vmatpush2.msra.mxu0 0.0
    %493 = vmatprep.subr.mxu0 0.0
    %494 = vmatpush2.msra.mxu0 0.0
    %495 = vmatprep.subr.mxu0 0.0
    %496 = vmatpush2.msra.mxu0 0.0
    %497 = vmatprep.subr.mxu0 0.0
    %498 = vmatpush2.msra.mxu0 0.0
    %499 = vmatprep.subr.mxu0 0.0
    %500 = vmatpush2.msra.mxu0 0.0
    %501 = vmatprep.subr.mxu0 0.0
    %502 = vmatpush2.msra.mxu0 0.0
    %503 = vmatprep.subr.mxu0 0.0
    %504 = vmatpush2.msra.mxu0 0.0
    %505 = vmatprep.subr.mxu0 0.0
    %506 = vmatpush2.msra.mxu0 0.0
    %507 = vmatprep.subr.mxu0 0.0
    %508 = vmatpush2.msra.mxu0 0.0
    %509 = vmatprep.subr.mxu0 0.0
    %510 = vmatpush2.msra.mxu0 0.0
    %511 = vmatprep.mubr.f32.mxu0 0.0
    %v512 = vand.u32 %v40, 4294901760
    %513 = vmatmul.mubr.f32.gmra.mxu0 %v512
    %v514 = vpop.f32.mrf.mxu0
    %v515 = vadd.f32 %v441, %v514
    %v516 = vpop.f32.mrf.mxu0
    %517 = vdwg.mxu0
    %518 = vst [vmem:[#allocation5] sm:$0xff] %v515
    // Predicated region
    $region14: #{tpu_custom_call.1} parent=1 // pred_check
      _
    $region15: #{tpu_custom_call.1} parent=1 // pred_check_branch
      %520 = sbr.rel (0) target = $region17
    $region16: #{tpu_custom_call.1} parent=1 // pred_region
      %s522 = ssub.s32 128, 128
      %523 = vsyncadd [#allocation4], %s522
      %s525 = sshll.u32 [#allocation5], 4
      %s526 = int_to_ptr.vmem [resolvable:$true] %s525
      %528 = dma.vmem_to_hbm [thread:$0]  %s526, 128, %s2, [#allocation4]
    $region17: #{tpu_custom_call.1} parent=1 // pred_fallthru
      _
    // Predicated region
    $region18: #{tpu_custom_call.1} parent=1 // pred_check
      _
    $region19: #{tpu_custom_call.1} parent=1 // pred_check_branch
      %530 = sbr.rel (0) target = $region21
    $region20: #{tpu_custom_call.1} parent=1 // pred_region
      %531 = dma.done [#allocation4], 128
    $region21: #{tpu_custom_call.1} parent=1 // pred_fallthru
      _
    %532 = vsyncpa [#allocation3], 1
    %533 = vsyncpa [#allocation4], 1

</llo_original>
